<compile_context>
chip_gen: v7x
topology: tpu7x:2x2x1
jax: 0.10.0
libtpu: 0.0.40
codegen_flags: <defaults>
</compile_context>

<pallas_src>
import jax
import jax.numpy as jnp
import numpy as np
from jax.experimental import pallas as pl
from jax.experimental.pallas import tpu as pltpu

# ---------------- model dims (synthetic, small) ----------------
N_GRAPHS = 4        # number of NeighborLoader batches processed per call
N_NODES  = 64       # nodes per sampled subgraph
N_EDGES  = 256      # edges per subgraph
IN_CH    = 128      # data.x feature dim (FakeDataset num_channels=128)
H1       = 64       # conv1 out
H2       = 32       # l1 out
H3       = 16       # conv2 out
N_CLS    = 10       # torch.numel(torch.unique(data.y)) -> FakeDataset default 10
OUT_PAD  = 128      # lane-dense padded classifier width
NEG_BIG  = -1e9     # bias for padded logit columns (exp underflows to 0)

# row offsets of the packed weight slab [W_ROWS, 128] (all bf16, lane-padded)
W1_LO,  W1_HI  = 0,      IN_CH            # [128,128]  [Wrel1 | Wroot1]
WL1_LO, WL1_HI = W1_HI,  W1_HI + H1       # [ 64,128]  wl1 in lanes [:H2]
W2_LO,  W2_HI  = WL1_HI, WL1_HI + H2      # [ 32,128]  [Wrel2|Wroot2] in lanes [:2*H3]
WL2_LO, WL2_HI = W2_HI,  W2_HI + H3       # [ 16,128]  wl2 padded to 128 classes
W_ROWS = WL2_HI                           # 240


def gcn_kernel(x_ref, a_ref, w_ref, b_ref, out_ref):
    f32, bf16 = jnp.float32, jnp.bfloat16

    x = x_ref[0]                                   # [N, IN_CH] bf16
    a = a_ref[0]                                   # [N, N]     bf16 integer counts

    # static sub-views of the packed slabs
    w1c = w_ref[W1_LO:W1_HI, :]                    # [IN_CH, 2*H1]  bf16
    wl1 = w_ref[WL1_LO:WL1_HI, :H2]                # [H1, H2]       bf16
    w2c = w_ref[W2_LO:W2_HI, :2 * H3]              # [H2, 2*H3]     bf16
    wl2 = w_ref[WL2_LO:WL2_HI, :]                  # [H3, OUT_PAD]  bf16

    b1  = b_ref[0:1, :H1]                          # [1, H1]      f32
    bl1 = b_ref[1:2, :H2]                          # [1, H2]      f32
    b2  = b_ref[2:3, :H3]                          # [1, H3]      f32
    bl2 = b_ref[3:4, :]                            # [1, OUT_PAD] f32 (pad = -1e9)

    # ---- conv1: GraphConv(IN_CH -> H1), sum aggregation, reassociated ----
    p1 = jnp.dot(x, w1c, preferred_element_type=f32)                    # [N, 2*H1]
    h1 = (jnp.dot(a, p1[:, :H1].astype(bf16), preferred_element_type=f32)
          + p1[:, H1:] + b1)                                            # [N, H1] f32

    # ---- l1 + relu (f32 elementwise) ----
    h = jnp.dot(h1.astype(bf16), wl1, preferred_element_type=f32) + bl1
    h = jnp.maximum(h, 0.0)                                             # [N, H2] f32

    # ---- conv2: GraphConv(H2 -> H3), reassociated ----
    p2 = jnp.dot(h.astype(bf16), w2c, preferred_element_type=f32)       # [N, 2*H3]
    h2 = (jnp.dot(a, p2[:, :H3].astype(bf16), preferred_element_type=f32)
          + p2[:, H3:] + b2)                                            # [N, H3] f32

    # ---- l2 into a lane-dense padded slab (padded columns carry -1e9 bias) ----
    logits = (jnp.dot(h2.astype(bf16), wl2, preferred_element_type=f32)
              + bl2)                                                    # [N, OUT_PAD]

    # ---- log_softmax over dim=1 (f32); padded lanes contribute exp(-big)=0 ----
    m = jnp.max(logits, axis=1, keepdims=True)
    z = logits - m
    lse = jnp.log(jnp.sum(jnp.exp(z), axis=1, keepdims=True))
    out_ref[0] = z - lse


def gcn_forward(x_bf, adj_bf, w_slab, b_slab):
    G, N, C = x_bf.shape

    # advisory cost estimate (kernel is tiny / latency-bound)
    macs = (N * C * (2 * H1) + N * N * H1 + N * H1 * H2
            + N * H2 * (2 * H3) + N * N * H3 + N * H3 * OUT_PAD)
    flops = G * 2 * macs
    transcendentals = G * (N * OUT_PAD + N)
    bytes_accessed = (G * (N * C * 2 + N * N * 2 + N * OUT_PAD * 4)
                      + w_slab.size * 2 + b_slab.size * 4)

    out = pl.pallas_call(
        gcn_kernel,
        out_shape=jax.ShapeDtypeStruct((G, N, OUT_PAD), jnp.float32),
        grid=(G,),
        in_specs=[
            pl.BlockSpec((1, N, C), lambda g: (g, 0, 0)),     # per-graph features
            pl.BlockSpec((1, N, N), lambda g: (g, 0, 0)),     # per-graph adjacency
            pl.BlockSpec(w_slab.shape, lambda g: (0, 0)),     # weights: VMEM-resident
            pl.BlockSpec(b_slab.shape, lambda g: (0, 0)),     # biases:  VMEM-resident
        ],
        out_specs=pl.BlockSpec((1, N, OUT_PAD), lambda g: (g, 0, 0)),
        compiler_params=pltpu.CompilerParams(
            dimension_semantics=("parallel",)),
        cost_estimate=pl.CostEstimate(
            flops=flops, transcendentals=transcendentals,
            bytes_accessed=bytes_accessed),
    )(x_bf, adj_bf, w_slab, b_slab)
    return out[:, :, :N_CLS]


# ---------------- parameter prep ----------------
def init_params(key):
    ks = jax.random.split(key, 10)
    s = 0.1

    def w(k, shape):  # weights stored as [in, out]
        return jax.random.normal(k, shape, jnp.float32) * s

    w1r = w(ks[0], (IN_CH, H1)); b1 = w(ks[1], (1, H1))
    w1s = w(ks[2], (IN_CH, H1))
    wl1 = w(ks[3], (H1, H2));    bl1 = w(ks[4], (1, H2))
    w2r = w(ks[5], (H2, H3));    b2 = w(ks[6], (1, H3))
    w2s = w(ks[7], (H2, H3))
    wl2 = w(ks[8], (H3, N_CLS)); bl2 = w(ks[9], (1, N_CLS))
    return (w1r, b1, w1s, wl1, bl1, w2r, b2, w2s, wl2, bl2)


def quantize_params(params):
    """Weights -> bf16 (what the kernel consumes); biases stay f32."""
    (w1r, b1, w1s, wl1, bl1, w2r, b2, w2s, wl2, bl2) = params
    bf = lambda t: t.astype(jnp.bfloat16)
    return (bf(w1r), b1, bf(w1s), bf(wl1), bl1, bf(w2r), b2, bf(w2s), bf(wl2), bl2)


def pack_params(qparams):
    """One bf16 weight slab [W_ROWS, 128] + one f32 bias slab [4, 128]."""
    (w1r, b1, w1s, wl1, bl1, w2r, b2, w2s, wl2, bl2) = qparams

    w1cat = jnp.concatenate([w1r, w1s], axis=1)                       # [IN_CH, 2*H1]
    w2cat = jnp.concatenate([w2r, w2s], axis=1)                       # [H2, 2*H3]

    w_slab = jnp.concatenate([
        w1cat,                                                        # rows   0:128
        jnp.zeros((H1, 128), jnp.bfloat16).at[:, :H2].set(wl1),       # rows 128:192
        jnp.zeros((H2, 128), jnp.bfloat16).at[:, :2 * H3].set(w2cat), # rows 192:224
        jnp.zeros((H3, 128), jnp.bfloat16).at[:, :N_CLS].set(wl2),    # rows 224:240
    ], axis=0)
    assert w_slab.shape == (W_ROWS, 128)

    b_slab = jnp.zeros((4, 128), jnp.float32)
    b_slab = b_slab.at[0, :H1].set(b1[0])
    b_slab = b_slab.at[1, :H2].set(bl1[0])
    b_slab = b_slab.at[2, :H3].set(b2[0])
    b_slab = b_slab.at[3, :].set(NEG_BIG)
    b_slab = b_slab.at[3, :N_CLS].set(bl2[0])
    return w_slab, b_slab


def reference_forward(x_bf, adj_bf, qparams):
    """Pure-JAX f32 forward in the ORIGINAL GraphConv factorization, using the
    same bf16-quantized inputs/weights the kernel consumes."""
    (w1r, b1, w1s, wl1, bl1, w2r, b2, w2s, wl2, bl2) = [
        p.astype(jnp.float32) for p in qparams]
    x = x_bf.astype(jnp.float32)                 # [G, N, C]
    a = adj_bf.astype(jnp.float32)               # [G, N, N]
    agg1 = jnp.einsum('gij,gjc->gic', a, x)
    h1 = agg1 @ w1r + b1 + x @ w1s
    h = jnp.maximum(h1 @ wl1 + bl1, 0.0)
    agg2 = jnp.einsum('gij,gjc->gic', a, h)
    h2 = agg2 @ w2r + b2 + h @ w2s
    logits = h2 @ wl2 + bl2
    return jax.nn.log_softmax(logits, axis=-1)


if __name__ == "__main__":
    key = jax.random.PRNGKey(0)
    k_x, k_src, k_dst, k_p = jax.random.split(key, 4)

    # node features per graph
    x = jax.random.normal(k_x, (N_GRAPHS, N_NODES, IN_CH), jnp.float32)

    # edge_index per graph [2, E] (row 0 = source, row 1 = target), as in PyG
    src = jax.random.randint(k_src, (N_GRAPHS, N_EDGES), 0, N_NODES)
    dst = jax.random.randint(k_dst, (N_GRAPHS, N_EDGES), 0, N_NODES)

    # dense adjacency for sum aggregation: A[g, i, j] = #edges j -> i
    g_idx = jnp.broadcast_to(jnp.arange(N_GRAPHS)[:, None], (N_GRAPHS, N_EDGES))
    adj = jnp.zeros((N_GRAPHS, N_NODES, N_NODES),
                    jnp.float32).at[g_idx, dst, src].add(1.0)
    # integer edge counts are exact in bf16 only up to 256
    assert float(jnp.max(adj)) <= 256.0

    params = init_params(k_p)

    # bf16 for the big operands (x, adj) and all weights; biases stay f32.
    x_bf = x.astype(jnp.bfloat16)
    adj_bf = adj.astype(jnp.bfloat16)
    qparams = quantize_params(params)
    w_slab, b_slab = pack_params(qparams)

    out = gcn_forward(x_bf, adj_bf, w_slab, b_slab)
    out = jax.block_until_ready(out)

    ref = jax.block_until_ready(reference_forward(x_bf, adj_bf, qparams))
    # Tolerance accounts for bf16 quantization of intermediate activations
    # fed to the MXU (reference keeps activations in f32).
    np.testing.assert_allclose(np.asarray(out), np.asarray(ref),
                               rtol=2e-2, atol=3e-2)

    print("KERNEL_OK")
</pallas_src>

<mosaic_0001>
module attributes {stable_mosaic.version = 11 : i64} {
  func.func @gcn_kernel(%arg0: i32, %arg1: memref<1x64x128xbf16, #tpu.memory_space<vmem>>, %arg2: memref<1x64x64xbf16, #tpu.memory_space<vmem>>, %arg3: memref<240x128xbf16, #tpu.memory_space<vmem>>, %arg4: memref<4x128xf32, #tpu.memory_space<vmem>>, %arg5: memref<1x64x128xf32, #tpu.memory_space<vmem>>) attributes {dimension_semantics = [#tpu.dimension_semantics<parallel>], iteration_bounds = array<i64: 4>, scalar_prefetch = 0 : i64, scratch_operands = 0 : i64, tpu.core_type = #tpu.core_type<tc>, window_params = [{transform_indices = @transform_0, window_bounds = array<i64: 1, 64, 128>}, {transform_indices = @transform_1, window_bounds = array<i64: 1, 64, 64>}, {pipeline_mode = #tpu.pipeline_mode<synchronous>, transform_indices = @transform_2, window_bounds = array<i64: 240, 128>}, {pipeline_mode = #tpu.pipeline_mode<synchronous>, transform_indices = @transform_3, window_bounds = array<i64: 4, 128>}, {transform_indices = @transform_4, window_bounds = array<i64: 1, 64, 128>}]} {
    %c0 = arith.constant 0 : index
    %c0_0 = arith.constant 0 : index
    %c0_1 = arith.constant 0 : index
    %0 = vector.load %arg1[%c0, %c0_0, %c0_1] : memref<1x64x128xbf16, #tpu.memory_space<vmem>>, vector<1x64x128xbf16>
    %1 = vector.shape_cast %0 : vector<1x64x128xbf16> to vector<64x128xbf16>
    %c0_2 = arith.constant 0 : index
    %c0_3 = arith.constant 0 : index
    %c0_4 = arith.constant 0 : index
    %2 = vector.load %arg2[%c0_2, %c0_3, %c0_4] : memref<1x64x64xbf16, #tpu.memory_space<vmem>>, vector<1x64x64xbf16>
    %3 = vector.shape_cast %2 : vector<1x64x64xbf16> to vector<64x64xbf16>
    %c0_5 = arith.constant 0 : index
    %c0_6 = arith.constant 0 : index
    %4 = vector.load %arg3[%c0_5, %c0_6] : memref<240x128xbf16, #tpu.memory_space<vmem>>, vector<128x128xbf16>
    %c128 = arith.constant 128 : index
    %c0_7 = arith.constant 0 : index
    %5 = vector.load %arg3[%c128, %c0_7] : memref<240x128xbf16, #tpu.memory_space<vmem>>, vector<64x32xbf16>
    %c192 = arith.constant 192 : index
    %c0_8 = arith.constant 0 : index
    %6 = vector.load %arg3[%c192, %c0_8] : memref<240x128xbf16, #tpu.memory_space<vmem>>, vector<32x32xbf16>
    %c224 = arith.constant 224 : index
    %c0_9 = arith.constant 0 : index
    %7 = vector.load %arg3[%c224, %c0_9] : memref<240x128xbf16, #tpu.memory_space<vmem>>, vector<16x128xbf16>
    %c0_10 = arith.constant 0 : index
    %c0_11 = arith.constant 0 : index
    %8 = vector.load %arg4[%c0_10, %c0_11] : memref<4x128xf32, #tpu.memory_space<vmem>>, vector<1x64xf32>
    %c1 = arith.constant 1 : index
    %c0_12 = arith.constant 0 : index
    %9 = vector.load %arg4[%c1, %c0_12] : memref<4x128xf32, #tpu.memory_space<vmem>>, vector<1x32xf32>
    %c2 = arith.constant 2 : index
    %c0_13 = arith.constant 0 : index
    %10 = vector.load %arg4[%c2, %c0_13] : memref<4x128xf32, #tpu.memory_space<vmem>>, vector<1x16xf32>
    %c3 = arith.constant 3 : index
    %c0_14 = arith.constant 0 : index
    %11 = vector.load %arg4[%c3, %c0_14] : memref<4x128xf32, #tpu.memory_space<vmem>>, vector<1x128xf32>
    %cst = arith.constant dense<0.000000e+00> : vector<64x128xf32>
    %12 = tpu.matmul %1, %4, %cst {dimension_numbers = #tpu.dot_dimension_numbers<[1], [0], [0], [1], [0, 0, 1, 1], [], []>} : vector<64x128xbf16>, vector<128x128xbf16>, vector<64x128xf32> -> vector<64x128xf32>
    %13 = vector.extract_strided_slice %12 {offsets = [0, 0], sizes = [64, 64], strides = [1, 1]} : vector<64x128xf32> to vector<64x64xf32>
    %14 = arith.truncf %13 : vector<64x64xf32> to vector<64x64xbf16>
    %cst_15 = arith.constant dense<0.000000e+00> : vector<64x64xf32>
    %15 = tpu.matmul %3, %14, %cst_15 {dimension_numbers = #tpu.dot_dimension_numbers<[1], [0], [0], [1], [0, 0, 1, 1], [], []>} : vector<64x64xbf16>, vector<64x64xbf16>, vector<64x64xf32> -> vector<64x64xf32>
    %16 = vector.extract_strided_slice %12 {offsets = [0, 64], sizes = [64, 64], strides = [1, 1]} : vector<64x128xf32> to vector<64x64xf32>
    %17 = arith.addf %15, %16 : vector<64x64xf32>
    %18 = vector.broadcast %8 : vector<1x64xf32> to vector<64x64xf32>
    %19 = arith.addf %17, %18 : vector<64x64xf32>
    %20 = arith.truncf %19 : vector<64x64xf32> to vector<64x64xbf16>
    %cst_16 = arith.constant dense<0.000000e+00> : vector<64x32xf32>
    %21 = tpu.matmul %20, %5, %cst_16 {dimension_numbers = #tpu.dot_dimension_numbers<[1], [0], [0], [1], [0, 0, 1, 1], [], []>} : vector<64x64xbf16>, vector<64x32xbf16>, vector<64x32xf32> -> vector<64x32xf32>
    %22 = vector.broadcast %9 : vector<1x32xf32> to vector<64x32xf32>
    %23 = arith.addf %21, %22 : vector<64x32xf32>
    %cst_17 = arith.constant 0.000000e+00 : f32
    %24 = vector.broadcast %cst_17 : f32 to vector<64x32xf32>
    %25 = arith.maximumf %23, %24 : vector<64x32xf32>
    %26 = arith.truncf %25 : vector<64x32xf32> to vector<64x32xbf16>
    %cst_18 = arith.constant dense<0.000000e+00> : vector<64x32xf32>
    %27 = tpu.matmul %26, %6, %cst_18 {dimension_numbers = #tpu.dot_dimension_numbers<[1], [0], [0], [1], [0, 0, 1, 1], [], []>} : vector<64x32xbf16>, vector<32x32xbf16>, vector<64x32xf32> -> vector<64x32xf32>
    %28 = vector.extract_strided_slice %27 {offsets = [0, 0], sizes = [64, 16], strides = [1, 1]} : vector<64x32xf32> to vector<64x16xf32>
    %29 = arith.truncf %28 : vector<64x16xf32> to vector<64x16xbf16>
    %cst_19 = arith.constant dense<0.000000e+00> : vector<64x16xf32>
    %30 = tpu.matmul %3, %29, %cst_19 {dimension_numbers = #tpu.dot_dimension_numbers<[1], [0], [0], [1], [0, 0, 1, 1], [], []>} : vector<64x64xbf16>, vector<64x16xbf16>, vector<64x16xf32> -> vector<64x16xf32>
    %31 = vector.extract_strided_slice %27 {offsets = [0, 16], sizes = [64, 16], strides = [1, 1]} : vector<64x32xf32> to vector<64x16xf32>
    %32 = arith.addf %30, %31 : vector<64x16xf32>
    %33 = vector.broadcast %10 : vector<1x16xf32> to vector<64x16xf32>
    %34 = arith.addf %32, %33 : vector<64x16xf32>
    %35 = arith.truncf %34 : vector<64x16xf32> to vector<64x16xbf16>
    %cst_20 = arith.constant dense<0.000000e+00> : vector<64x128xf32>
    %36 = tpu.matmul %35, %7, %cst_20 {dimension_numbers = #tpu.dot_dimension_numbers<[1], [0], [0], [1], [0, 0, 1, 1], [], []>} : vector<64x16xbf16>, vector<16x128xbf16>, vector<64x128xf32> -> vector<64x128xf32>
    %37 = vector.broadcast %11 : vector<1x128xf32> to vector<64x128xf32>
    %38 = arith.addf %36, %37 : vector<64x128xf32>
    %cst_21 = arith.constant dense<0xFF800000> : vector<64xf32>
    %39 = vector.multi_reduction <maximumf>, %38, %cst_21 [1] : vector<64x128xf32> to vector<64xf32>
    %40 = vector.shape_cast %39 : vector<64xf32> to vector<64x1xf32>
    %41 = vector.broadcast %40 : vector<64x1xf32> to vector<64x128xf32>
    %42 = arith.subf %38, %41 : vector<64x128xf32>
    %43 = math.exp %42 : vector<64x128xf32>
    %cst_22 = arith.constant dense<0.000000e+00> : vector<64xf32>
    %44 = vector.multi_reduction <add>, %43, %cst_22 [1] : vector<64x128xf32> to vector<64xf32>
    %45 = vector.shape_cast %44 : vector<64xf32> to vector<64x1xf32>
    %46 = math.log %45 : vector<64x1xf32>
    %47 = vector.broadcast %46 : vector<64x1xf32> to vector<64x128xf32>
    %48 = arith.subf %42, %47 : vector<64x128xf32>
    %c0_23 = arith.constant 0 : index
    %c0_24 = arith.constant 0 : index
    %c0_25 = arith.constant 0 : index
    %49 = vector.load %arg5[%c0_23, %c0_24, %c0_25] : memref<1x64x128xf32, #tpu.memory_space<vmem>>, vector<1x64x128xf32>
    %50 = vector.shape_cast %49 : vector<1x64x128xf32> to vector<64x128xf32>
    %51 = vector.shape_cast %48 : vector<64x128xf32> to vector<1x64x128xf32>
    tpu.vector_store %arg5[%c0_23, %c0_24, %c0_25], %51 {strides = array<i32>} : memref<1x64x128xf32, #tpu.memory_space<vmem>>, vector<1x64x128xf32>,
    return
  }
  func.func @transform_0(%arg0: i32) -> (i32, i32, i32) {
    %c0_i32 = arith.constant 0 : i32
    %c0_i32_0 = arith.constant 0 : i32
    %c0_i32_1 = arith.constant 0 : i32
    return %arg0, %c0_i32, %c0_i32_0 : i32, i32, i32
  }
  func.func @transform_1(%arg0: i32) -> (i32, i32, i32) {
    %c0_i32 = arith.constant 0 : i32
    %c0_i32_0 = arith.constant 0 : i32
    %c0_i32_1 = arith.constant 0 : i32
    return %arg0, %c0_i32, %c0_i32_0 : i32, i32, i32
  }
  func.func @transform_2(%arg0: i32) -> (i32, i32) {
    %c0_i32 = arith.constant 0 : i32
    %c0_i32_0 = arith.constant 0 : i32
    %c0_i32_1 = arith.constant 0 : i32
    return %c0_i32, %c0_i32_0 : i32, i32
  }
  func.func @transform_3(%arg0: i32) -> (i32, i32) {
    %c0_i32 = arith.constant 0 : i32
    %c0_i32_0 = arith.constant 0 : i32
    %c0_i32_1 = arith.constant 0 : i32
    return %c0_i32, %c0_i32_0 : i32, i32
  }
  func.func @transform_4(%arg0: i32) -> (i32, i32, i32) {
    %c0_i32 = arith.constant 0 : i32
    %c0_i32_0 = arith.constant 0 : i32
    %c0_i32_1 = arith.constant 0 : i32
    return %arg0, %c0_i32, %c0_i32_0 : i32, i32, i32
  }
}

</mosaic_0001>

<llo_original>
// kernel: tpu_custom_call.1
$region0: #{tpu_custom_call.1}
  #allocation0 [shape = 'u32[]', space=smem, size = 0x4, offset = 0x4, fixed_abs, tag = 'smem constant byte address 0x4 - core index']
  #allocation1 [shape = 'u32[144,128]{1,0:T(1,128)}', space=vmem, size = 0x12000, scoped, tag = 'internal scratch']
  %s0 = inlined_call_operand.hbm [shape: bf16[4,64,128], index: 0, kind: input, shape index: {}]
  %s1 = inlined_call_operand.hbm [shape: bf16[4,64,64], index: 1, kind: input, shape index: {}]
  %s2 = inlined_call_operand.hbm [shape: bf16[240,128], index: 2, kind: input, shape index: {}]
  %s3 = inlined_call_operand.vmem [shape: f32[4,128], index: 3, kind: input, shape index: {}]
  %s4 = inlined_call_operand.hbm [shape: f32[4,64,128], index: 4, kind: output, shape index: {}]
  %s5 = sld [smem:[#allocation0]]
  $region61: #{tpu_custom_call.1} parent=0
    _
  %s7 = ssub.s32 1, %s5
  %s8 = scalar_select 0, %s7, %s5
  $region1: #{tpu_custom_call.1} parent=0
    #allocation2 [shape = 'u8[32768]{0}', space=vmem, size = 0x8000, scoped, tag = 'input window, operand 0']
    #allocation3 [shape = 's32[2]{0}', space=sflag, size = 0x8, scoped, tag = 'scoped memory for tpu_custom_call.1']
    #allocation4 [shape = 's32[2]{0}', space=sflag, size = 0x8, scoped, tag = 'scoped memory for tpu_custom_call.1']
    #allocation5 [shape = 'u8[32768]{0}', space=vmem, size = 0x8000, scoped, tag = 'input window, operand 1']
    #allocation6 [shape = 's32[2]{0}', space=sflag, size = 0x8, scoped, tag = 'scoped memory for tpu_custom_call.1']
    #allocation7 [shape = 'u8[61440]{0}', space=vmem, size = 0xf000, scoped, tag = 'input window, operand 2, single buffered']
    #allocation8 [shape = 'u8[65536]{0}', space=vmem, size = 0x10000, scoped, tag = 'output window, operand 0']
    %9 = vsyncpa [#allocation3], 0
    %s10 = scalar_lea.sflag [#allocation3], 1
    %11 = vsyncpa %s10, 0
    %12 = vsyncpa [#allocation6], 0
    %s13 = scalar_lea.sflag [#allocation6], 1
    %14 = vsyncpa %s13, 0
    %15 = vsyncpa [#allocation4], 0
    %s16 = scalar_lea.sflag [#allocation4], 1
    %17 = vsyncpa %s16, 0
    loop: start=0, step=1, limit=6
    $region2: #{tpu_custom_call.1} parent=1 // loop_pre_header
      _
    $region3: #{tpu_custom_call.1} parent=1 // loop_header
      %s19 = sphi 0, %s23
      %p20 = scmp.ge.s32.totalorder %s19, 6
      %s29 = sphi 0, %s31
      %s32 = sphi 0, %s29
      %s33 = sphi 0, %s32
      %s49 = sphi 0, %s33
      %s55 = sphi 0, %s57
      %s58 = sphi 0, %s55
      %s59 = sphi 0, %s58
      %s75 = sphi 0, %s59
      %s79 = sphi 0, %s79
      %s81 = sphi 0, %s79
      %s82 = sphi 0, %s81
      %s96 = sphi 0, %s82
      %s100 = sphi 0, %s100
      %s102 = sphi 0, %s100
      %s103 = sphi 0, %s102
      %s117 = sphi 0, %s103
      %s123 = sphi 0, %s125
      %s126 = sphi 0, %s123
      %s127 = sphi 0, %s126
      %s143 = sphi 0, %s127
    $region4: #{tpu_custom_call.1} parent=1 // loop_header_branch
      %22 = sbr.rel (%p20) target = $region8
    $region5: #{tpu_custom_call.1} parent=1 // loop_body
      %s24 = ssub.s32 %s19, 1
      %s25 = ssub.s32 %s19, 2
      %s26 = sadd.s32 %s19, 1
      %s27 = ssub.s32 %s19, %s26
      %p28 = scmp.eq.s32.totalorder %s27, 0
      %s30 = sadd.s32 %s29, 1
      %s31 = scalar_select %p28, %s29, %s30
      %p34 = pneg %p28
      %p35 = scmp.eq.s32.totalorder %s19, 3
      %p36 = por %p34, %p35
      %p37 = scmp.ne.s32.totalorder %s29, %s32
      %p38 = scmp.eq.s32.totalorder %s19, 0
      %p39 = por %p37, %p38
      %p40 = scmp.ne.s32.totalorder %s29, %s32
      %p41 = scmp.eq.s32.totalorder %s24, 3
      %p42 = por %p40, %p41
      %p43 = scmp.ne.s32.totalorder %s32, %s33
      %p44 = scmp.eq.s32.totalorder %s24, 0
      %p45 = por %p43, %p44
      %p46 = scmp.ne.s32.totalorder %s32, %s33
      %p47 = scmp.eq.s32.totalorder %s25, 3
      %p48 = por %p46, %p47
      %p50 = scmp.ne.s32.totalorder %s33, %s49
      %p51 = scmp.eq.s32.totalorder %s25, 0
      %p52 = por %p50, %p51
      %s53 = ssub.s32 %s19, %s26
      %p54 = scmp.eq.s32.totalorder %s53, 0
      %s56 = sadd.s32 %s55, 1
      %s57 = scalar_select %p54, %s55, %s56
      %p60 = pneg %p54
      %p61 = scmp.eq.s32.totalorder %s19, 3
      %p62 = por %p60, %p61
      %p63 = scmp.ne.s32.totalorder %s55, %s58
      %p64 = scmp.eq.s32.totalorder %s19, 0
      %p65 = por %p63, %p64
      %p66 = scmp.ne.s32.totalorder %s55, %s58
      %p67 = scmp.eq.s32.totalorder %s24, 3
      %p68 = por %p66, %p67
      %p69 = scmp.ne.s32.totalorder %s58, %s59
      %p70 = scmp.eq.s32.totalorder %s24, 0
      %p71 = por %p69, %p70
      %p72 = scmp.ne.s32.totalorder %s58, %s59
      %p73 = scmp.eq.s32.totalorder %s25, 3
      %p74 = por %p72, %p73
      %p76 = scmp.ne.s32.totalorder %s59, %s75
      %p77 = scmp.eq.s32.totalorder %s25, 0
      %p78 = por %p76, %p77
      %s80 = sadd.s32 %s79, 1
      %p83 = scmp.eq.s32.totalorder %s19, 3
      %p84 = scmp.ne.s32.totalorder %s79, %s81
      %p85 = scmp.eq.s32.totalorder %s19, 0
      %p86 = por %p84, %p85
      %p87 = scmp.ne.s32.totalorder %s79, %s81
      %p88 = scmp.eq.s32.totalorder %s24, 3
      %p89 = por %p87, %p88
      %p90 = scmp.ne.s32.totalorder %s81, %s82
      %p91 = scmp.eq.s32.totalorder %s24, 0
      %p92 = por %p90, %p91
      %p93 = scmp.ne.s32.totalorder %s81, %s82
      %p94 = scmp.eq.s32.totalorder %s25, 3
      %p95 = por %p93, %p94
      %p97 = scmp.ne.s32.totalorder %s82, %s96
      %p98 = scmp.eq.s32.totalorder %s25, 0
      %p99 = por %p97, %p98
      %s101 = sadd.s32 %s100, 1
      %p104 = scmp.eq.s32.totalorder %s19, 3
      %p105 = scmp.ne.s32.totalorder %s100, %s102
      %p106 = scmp.eq.s32.totalorder %s19, 0
      %p107 = por %p105, %p106
      %p108 = scmp.ne.s32.totalorder %s100, %s102
      %p109 = scmp.eq.s32.totalorder %s24, 3
      %p110 = por %p108, %p109
      %p111 = scmp.ne.s32.totalorder %s102, %s103
      %p112 = scmp.eq.s32.totalorder %s24, 0
      %p113 = por %p111, %p112
      %p114 = scmp.ne.s32.totalorder %s102, %s103
      %p115 = scmp.eq.s32.totalorder %s25, 3
      %p116 = por %p114, %p115
      %p118 = scmp.ne.s32.totalorder %s103, %s117
      %p119 = scmp.eq.s32.totalorder %s25, 0
      %p120 = por %p118, %p119
      %s121 = ssub.s32 %s19, %s26
      %p122 = scmp.eq.s32.totalorder %s121, 0
      %s124 = sadd.s32 %s123, 1
      %s125 = scalar_select %p122, %s123, %s124
      %p128 = pneg %p122
      %p129 = scmp.eq.s32.totalorder %s19, 3
      %p130 = por %p128, %p129
      %p131 = scmp.ne.s32.totalorder %s123, %s126
      %p132 = scmp.eq.s32.totalorder %s19, 0
      %p133 = por %p131, %p132
      %p134 = scmp.ne.s32.totalorder %s123, %s126
      %p135 = scmp.eq.s32.totalorder %s24, 3
      %p136 = por %p134, %p135
      %p137 = scmp.ne.s32.totalorder %s126, %s127
      %p138 = scmp.eq.s32.totalorder %s24, 0
      %p139 = por %p137, %p138
      %p140 = scmp.ne.s32.totalorder %s126, %s127
      %p141 = scmp.eq.s32.totalorder %s25, 3
      %p142 = por %p140, %p141
      %p144 = scmp.ne.s32.totalorder %s127, %s143
      %p145 = scmp.eq.s32.totalorder %s25, 0
      %p146 = por %p144, %p145
      %p147 = scmp.le.s32.totalorder 1, %s19
      %p148 = scmp.lt.s32.totalorder %s19, 5
      %p149 = pnand %p147, %p148
      %p150 = pneg %p149
      // Predicated region
      $region9: #{tpu_custom_call.1} parent=5 // pred_check
        _
      $region10: #{tpu_custom_call.1} parent=5 // pred_check_branch
        %152 = sbr.rel (%p149) target = $region12
      $region11: #{tpu_custom_call.1} parent=5 // pred_region
        %s153 = ssub.s32 %s19, 1
        // Predicated region
        $region13: #{tpu_custom_call.1} parent=11 // pred_check
          %p154 = pneg %p92
        $region14: #{tpu_custom_call.1} parent=11 // pred_check_branch
          %156 = sbr.rel (%p154) target = $region16
        $region15: #{tpu_custom_call.1} parent=11 // pred_region
          %s158 = ssub.s32 1920, 1920
          %159 = vsyncadd [#allocation6], %s158
          %s160 = sshll.u32 [#allocation7], 4
          %s161 = int_to_ptr.vmem [resolvable:$true] %s160
          %166 = dma.hbm_to_vmem [thread:$0]  %s2, 1920, %s161, [#allocation6], 64, 64, 4
        $region16: #{tpu_custom_call.1} parent=11 // pred_fallthru
          _
        // Predicated region
        $region17: #{tpu_custom_call.1} parent=11 // pred_check
          %p167 = pneg %p113
        $region18: #{tpu_custom_call.1} parent=11 // pred_check_branch
          %169 = sbr.rel (%p167) target = $region20
        $region19: #{tpu_custom_call.1} parent=11 // pred_region
          _
        $region20: #{tpu_custom_call.1} parent=11 // pred_fallthru
          _
      $region12: #{tpu_custom_call.1} parent=5 // pred_fallthru
        _
      %p170 = scmp.lt.s32.totalorder %s19, 4
      // Predicated region
      $region21: #{tpu_custom_call.1} parent=5 // pred_check
        %p171 = pneg %p170
      $region22: #{tpu_custom_call.1} parent=5 // pred_check_branch
        %173 = sbr.rel (%p171) target = $region24
      $region23: #{tpu_custom_call.1} parent=5 // pred_region
        // Predicated region
        $region25: #{tpu_custom_call.1} parent=23 // pred_check
          %p174 = pneg %p39
        $region26: #{tpu_custom_call.1} parent=23 // pred_check_branch
          %176 = sbr.rel (%p174) target = $region28
        $region27: #{tpu_custom_call.1} parent=23 // pred_region
          %s177 = sand.u32 %s29, 1
          %s178 = scalar_lea.sflag [#allocation3], %s177
          %s179 = sand.u32 %s29, 1
          %s180 = smul.addr %s179, 32
          %s181 = scalar_lea.vmem [#allocation2], %s180
          %s183 = ssub.s32 512, 512
          %184 = vsyncadd %s178, %s183
          %s185 = smul.addr %s19, 8
          %s186 = smul.addr %s185, 64
          %s187 = scalar_lea.hbm %s0, %s186
          %s188 = sshll.u32 %s181, 4
          %s189 = int_to_ptr.vmem [resolvable:$true] %s188
          %194 = dma.hbm_to_vmem [thread:$0]  %s187, 512, %s189, %s178, 64, 64, 4
        $region28: #{tpu_custom_call.1} parent=23 // pred_fallthru
          _
        // Predicated region
        $region29: #{tpu_custom_call.1} parent=23 // pred_check
          %p195 = pneg %p65
        $region30: #{tpu_custom_call.1} parent=23 // pred_check_branch
          %197 = sbr.rel (%p195) target = $region32
        $region31: #{tpu_custom_call.1} parent=23 // pred_region
          %s198 = sand.u32 %s19, 1
          %s199 = scalar_lea.sflag [#allocation6], %s198
          %s200 = sand.u32 %s55, 1
          %s201 = smul.addr %s200, 32
          %s202 = scalar_lea.vmem [#allocation5], %s201
          %s204 = ssub.s32 512, 512
          %205 = vsyncadd %s199, %s204
          %s206 = smul.addr %s19, 8
          %s207 = smul.addr %s206, 64
          %s208 = scalar_lea.hbm %s1, %s207
          %s209 = sshll.u32 %s202, 4
          %s210 = int_to_ptr.vmem [resolvable:$true] %s209
          %215 = dma.hbm_to_vmem [thread:$0]  %s208, 512, %s210, %s199, 64, 64, 4
        $region32: #{tpu_custom_call.1} parent=23 // pred_fallthru
          _
      $region24: #{tpu_custom_call.1} parent=5 // pred_fallthru
        _
      %p216 = scmp.le.s32.totalorder 1, %s19
      %p217 = scmp.lt.s32.totalorder %s19, 5
      %p218 = pnand %p216, %p217
      %p219 = pneg %p218
      // Predicated region
      $region33: #{tpu_custom_call.1} parent=5 // pred_check
        _
      $region34: #{tpu_custom_call.1} parent=5 // pred_check_branch
        %221 = sbr.rel (%p218) target = $region36
      $region35: #{tpu_custom_call.1} parent=5 // pred_region
        %s222 = ssub.s32 %s19, 1
        %s223 = sand.u32 %s32, 1
        %s224 = scalar_lea.sflag [#allocation3], %s223
        %s225 = sand.u32 %s32, 1
        %s226 = smul.addr %s225, 32
        %s227 = scalar_lea.vmem [#allocation2], %s226
        // Predicated region
        $region37: #{tpu_custom_call.1} parent=35 // pred_check
          %p228 = pneg %p45
        $region38: #{tpu_custom_call.1} parent=35 // pred_check_branch
          %230 = sbr.rel (%p228) target = $region40
        $region39: #{tpu_custom_call.1} parent=35 // pred_region
          %231 = dma.done %s224, 512
        $region40: #{tpu_custom_call.1} parent=35 // pred_fallthru
          _
        %s232 = sand.u32 %s24, 1
        %s233 = scalar_lea.sflag [#allocation6], %s232
        %s234 = sand.u32 %s58, 1
        %s235 = smul.addr %s234, 32
        %s236 = scalar_lea.vmem [#allocation5], %s235
        // Predicated region
        $region41: #{tpu_custom_call.1} parent=35 // pred_check
          %p237 = pneg %p71
        $region42: #{tpu_custom_call.1} parent=35 // pred_check_branch
          %239 = sbr.rel (%p237) target = $region44
        $region43: #{tpu_custom_call.1} parent=35 // pred_region
          %240 = dma.done %s233, 512
        $region44: #{tpu_custom_call.1} parent=35 // pred_fallthru
          _
        // Predicated region
        $region45: #{tpu_custom_call.1} parent=35 // pred_check
          %p241 = pneg %p92
        $region46: #{tpu_custom_call.1} parent=35 // pred_check_branch
          %243 = sbr.rel (%p241) target = $region48
        $region47: #{tpu_custom_call.1} parent=35 // pred_region
          %244 = dma.done [#allocation6], 1920
        $region48: #{tpu_custom_call.1} parent=35 // pred_fallthru
          _
        %s245 = sand.u32 %s32, 1
        %s246 = scalar_lea.sflag [#allocation3], %s245
        %s247 = sand.u32 %s32, 1
        %s248 = smul.addr %s247, 32
        %s249 = scalar_lea.vmem [#allocation2], %s248
        %p250 = pneg %p45
        %p251 = pneg %p42
        %s252 = sand.u32 %s24, 1
        %s253 = scalar_lea.sflag [#allocation6], %s252
        %s254 = sand.u32 %s58, 1
        %s255 = smul.addr %s254, 32
        %s256 = scalar_lea.vmem [#allocation5], %s255
        %p257 = pneg %p71
        %p258 = pneg %p68
        %p259 = pneg %p92
        %p260 = pneg %p89
        %p261 = pneg %p113
        %p262 = pneg %p110
        %p263 = pneg %p139
        %p264 = pneg %p136
        %s265 = sand.u32 %s126, 1
        %s266 = scalar_lea.sflag [#allocation4], %s265
        %s267 = sand.u32 %s126, 1
        %s268 = smul.addr %s267, 64
        %s269 = scalar_lea.vmem [#allocation8], %s268
        %v271 = vld [vmem:[%s227] sm:$0xf]
        %v272 = vld [vmem:[%s227 + $0x4] sm:$0xf]
        %v273 = vld [vmem:[%s227 + $0x8] sm:$0xf]
        %v274 = vld [vmem:[%s227 + $0xc] sm:$0xf]
        %v275 = vld [vmem:[%s227 + $0x10] sm:$0xf]
        %v276 = vld [vmem:[%s227 + $0x14] sm:$0xf]
        %v277 = vld [vmem:[%s227 + $0x18] sm:$0xf]
        %v278 = vld [vmem:[%s227 + $0x1c] sm:$0xf]
        %v279 = vld [vmem:[%s236] sm:$0xf]
        %v280 = vld [vmem:[%s236 + $0x4] sm:$0xf]
        %v281 = vld [vmem:[%s236 + $0x8] sm:$0xf]
        %v282 = vld [vmem:[%s236 + $0xc] sm:$0xf]
        %v283 = vld [vmem:[%s236 + $0x10] sm:$0xf]
        %v284 = vld [vmem:[%s236 + $0x14] sm:$0xf]
        %v285 = vld [vmem:[%s236 + $0x18] sm:$0xf]
        %v286 = vld [vmem:[%s236 + $0x1c] sm:$0xf]
        %v287 = vld [vmem:[#allocation7] sm:$0xf]
        %v288 = vld [vmem:[#allocation7 + $0x4] sm:$0xf]
        %v289 = vld [vmem:[#allocation7 + $0x8] sm:$0xf]
        %v290 = vld [vmem:[#allocation7 + $0xc] sm:$0xf]
        %v291 = vld [vmem:[#allocation7 + $0x10] sm:$0xf]
        %v292 = vld [vmem:[#allocation7 + $0x14] sm:$0xf]
        %v293 = vld [vmem:[#allocation7 + $0x18] sm:$0xf]
        %v294 = vld [vmem:[#allocation7 + $0x1c] sm:$0xf]
        %v295 = vld [vmem:[#allocation7 + $0x20] sm:$0xf]
        %v296 = vld [vmem:[#allocation7 + $0x24] sm:$0xf]
        %v297 = vld [vmem:[#allocation7 + $0x28] sm:$0xf]
        %v298 = vld [vmem:[#allocation7 + $0x2c] sm:$0xf]
        %v299 = vld [vmem:[#allocation7 + $0x30] sm:$0xf]
        %v300 = vld [vmem:[#allocation7 + $0x34] sm:$0xf]
        %v301 = vld [vmem:[#allocation7 + $0x38] sm:$0xf]
        %v302 = vld [vmem:[#allocation7 + $0x3c] sm:$0xf]
        %v303 = vld [vmem:[#allocation7 + $0x40] sm:$0xf]
        %v304 = vld [vmem:[#allocation7 + $0x44] sm:$0xf]
        %v305 = vld [vmem:[#allocation7 + $0x48] sm:$0xf]
        %v306 = vld [vmem:[#allocation7 + $0x4c] sm:$0xf]
        %v307 = vld [vmem:[#allocation7 + $0x50] sm:$0xf]
        %v308 = vld [vmem:[#allocation7 + $0x54] sm:$0xf]
        %v309 = vld [vmem:[#allocation7 + $0x58] sm:$0xf]
        %v310 = vld [vmem:[#allocation7 + $0x5c] sm:$0xf]
        %v311 = vld [vmem:[#allocation7 + $0x60] sm:$0xf]
        %v312 = vld [vmem:[#allocation7 + $0x64] sm:$0xf]
        %v313 = vld [vmem:[#allocation7 + $0x68] sm:$0xf]
        %v314 = vld [vmem:[#allocation7 + $0x6c] sm:$0xf]
        %v315 = vld [vmem:[#allocation7 + $0x70] sm:$0xf]
        %v316 = vld [vmem:[#allocation7 + $0x74] sm:$0xf]
        %v317 = vld [vmem:[%s3] sm:$0x1]
        %v318 = vld [vmem:[%s3 + $0x1] sm:$0x1]
        %v319 = vld [vmem:[%s3 + $0x2] sm:$0x1]
        %v320 = vld [vmem:[%s3 + $0x3] sm:$0x1]
        %v329 = vunpack.c.l.b16 %v271
        %v330 = vunpack.c.l.b16 %v272
        %v331 = vunpack.c.l.b16 %v273
        %v332 = vunpack.c.l.b16 %v274
        %v333 = vunpack.c.l.b16 %v275
        %v334 = vunpack.c.l.b16 %v276
        %v335 = vunpack.c.l.b16 %v277
        %v336 = vunpack.c.l.b16 %v278
        %v337 = vpack.c.b16 %v330, %v329
        %v338 = vpack.c.b16 %v332, %v331
        %v339 = vpack.c.b16 %v334, %v333
        %v340 = vpack.c.b16 %v336, %v335
        %v361 = vunpack.c.l.b16 %v287
        %v362 = vunpack.c.l.b16 %v288
        %v363 = vunpack.c.l.b16 %v289
        %v364 = vunpack.c.l.b16 %v290
        %v365 = vunpack.c.l.b16 %v291
        %v366 = vunpack.c.l.b16 %v292
        %v367 = vunpack.c.l.b16 %v293
        %v368 = vunpack.c.l.b16 %v294
        %v369 = vunpack.c.l.b16 %v295
        %v370 = vunpack.c.l.b16 %v296
        %v371 = vunpack.c.l.b16 %v297
        %v372 = vunpack.c.l.b16 %v298
        %v373 = vunpack.c.l.b16 %v299
        %v374 = vunpack.c.l.b16 %v300
        %v375 = vunpack.c.l.b16 %v301
        %v376 = vunpack.c.l.b16 %v302
        %v377 = vpack.c.b16 %v362, %v361
        %v378 = vpack.c.b16 %v364, %v363
        %v379 = vpack.c.b16 %v366, %v365
        %v380 = vpack.c.b16 %v368, %v367
        %v381 = vpack.c.b16 %v370, %v369
        %v382 = vpack.c.b16 %v372, %v371
        %v383 = vpack.c.b16 %v374, %v373
        %v384 = vpack.c.b16 %v376, %v375
        %393 = vmatprep.subr.bf16.mxu0 0
        %394 = vmatpush1.bf16.msra.mxu0 %v377
        %395 = vmatprep.subr.bf16.mxu0 0
        %396 = vmatpush1.bf16.msra.mxu0 %v378
        %397 = vmatprep.subr.bf16.mxu0 0
        %398 = vmatpush1.bf16.msra.mxu0 %v379
        %399 = vmatprep.subr.bf16.mxu0 0
        %400 = vmatpush1.bf16.msra.mxu0 %v380
        %401 = vmatprep.subr.bf16.mxu0 0
        %402 = vmatpush1.bf16.msra.mxu0 %v381
        %403 = vmatprep.subr.bf16.mxu0 0
        %404 = vmatpush1.bf16.msra.mxu0 %v382
        %405 = vmatprep.subr.bf16.mxu0 0
        %406 = vmatpush1.bf16.msra.mxu0 %v383
        %407 = vmatprep.subr.bf16.mxu0 0
        %408 = vmatpush1.bf16.msra.mxu0 %v384
        %409 = vmatprep.subr.bf16.mxu0 0
        %410 = vmatpush1.bf16.msra.mxu0 0
        %411 = vmatprep.subr.bf16.mxu0 0
        %412 = vmatpush1.bf16.msra.mxu0 0
        %413 = vmatprep.subr.bf16.mxu0 0
        %414 = vmatpush1.bf16.msra.mxu0 0
        %415 = vmatprep.subr.bf16.mxu0 0
        %416 = vmatpush1.bf16.msra.mxu0 0
        %417 = vmatprep.subr.bf16.mxu0 0
        %418 = vmatpush1.bf16.msra.mxu0 0
        %419 = vmatprep.subr.bf16.mxu0 0
        %420 = vmatpush1.bf16.msra.mxu0 0
        %421 = vmatprep.subr.bf16.mxu0 0
        %422 = vmatpush1.bf16.msra.mxu0 0
        %423 = vmatprep.subr.bf16.mxu0 0
        %424 = vmatpush1.bf16.msra.mxu0 0
        %425 = vmatprep.mubr.bf16.mxu0 0
        %426 = vmatmul.mubr.bf16.gmra.mrb[0].mxu0 %v337
        %v427 = vpop.f32.mrb[0].mxu0
        %v428 = vadd.f32 0.0, %v427
        %v429 = vpop.f32.mrb[0].mxu0
        %v430 = vpop.f32.mrb[0].mxu0
        %v431 = vadd.f32 0.0, %v430
        %v432 = vpop.f32.mrb[0].mxu0
        %433 = vmatprep.mubr.bf16.mxu0 0
        %434 = vmatmul.mubr.bf16.gmra.mrb[0].mxu0 %v338
        %v435 = vpop.f32.mrb[0].mxu0
        %v436 = vadd.f32 0.0, %v435
        %v437 = vpop.f32.mrb[0].mxu0
        %v438 = vpop.f32.mrb[0].mxu0
        %v439 = vadd.f32 0.0, %v438
        %v440 = vpop.f32.mrb[0].mxu0
        %441 = vmatprep.mubr.bf16.mxu0 0
        %442 = vmatmul.mubr.bf16.gmra.mrb[0].mxu0 %v339
        %v443 = vpop.f32.mrb[0].mxu0
        %v444 = vadd.f32 0.0, %v443
        %v445 = vpop.f32.mrb[0].mxu0
        %v446 = vpop.f32.mrb[0].mxu0
        %v447 = vadd.f32 0.0, %v446
        %v448 = vpop.f32.mrb[0].mxu0
        %449 = vmatprep.mubr.bf16.mxu0 0
        %450 = vmatmul.mubr.bf16.gmra.mrb[0].mxu0 %v340
        %v451 = vpop.f32.mrb[0].mxu0
        %v452 = vadd.f32 0.0, %v451
        %v453 = vpop.f32.mrb[0].mxu0
        %v454 = vpop.f32.mrb[0].mxu0
        %v455 = vadd.f32 0.0, %v454
        %v456 = vpop.f32.mrb[0].mxu0
        %457 = vdwg.mxu0
        %v458 = vpack.c.bf16 %v431, %v428
        %v459 = vpack.c.bf16 %v439, %v436
        %v460 = vpack.c.bf16 %v447, %v444
        %v461 = vpack.c.bf16 %v455, %v452
        %v470 = vunpack.c.l.b16 %v279
        %v471 = vunpack.c.l.b16 %v280
        %v472 = vunpack.c.l.b16 %v281
        %v473 = vunpack.c.l.b16 %v282
        %v474 = vunpack.c.l.b16 %v283
        %v475 = vunpack.c.l.b16 %v284
        %v476 = vunpack.c.l.b16 %v285
        %v477 = vunpack.c.l.b16 %v286
        %v478 = vpack.c.b16 %v471, %v470
        %v479 = vpack.c.b16 %v473, %v472
        %v480 = vpack.c.b16 %v475, %v474
        %v481 = vpack.c.b16 %v477, %v476
        %490 = vrot.lane.b32.xlu0 %v428, 64
        %v491 = vpop.permute.xlu0 %490
        %492 = vrot.lane.b32.xlu0 %v431, 64
        %v493 = vpop.permute.xlu0 %492
        %494 = vrot.lane.b32.xlu0 %v436, 64
        %v495 = vpop.permute.xlu0 %494
        %496 = vrot.lane.b32.xlu0 %v439, 64
        %v497 = vpop.permute.xlu0 %496
        %498 = vrot.lane.b32.xlu0 %v444, 64
        %v499 = vpop.permute.xlu0 %498
        %500 = vrot.lane.b32.xlu0 %v447, 64
        %v501 = vpop.permute.xlu0 %500
        %502 = vrot.lane.b32.xlu0 %v452, 64
        %v503 = vpop.permute.xlu0 %502
        %504 = vrot.lane.b32.xlu0 %v455, 64
        %v505 = vpop.permute.xlu0 %504
        %vm514 = vcmask 523264
        %v516 = vsel %vm514, %v478, 0
        %v519 = vsel %vm514, %v479, 0
        %v522 = vsel %vm514, %v480, 0
        %v525 = vsel %vm514, %v481, 0
        %527 = vmatprep.subr.bf16.mxu0 0
        %528 = vmatpush1.bf16.msra.mxu0 %v458
        %529 = vmatprep.subr.bf16.mxu0 0
        %530 = vmatpush1.bf16.msra.mxu0 %v459
        %531 = vmatprep.subr.bf16.mxu0 0
        %532 = vmatpush1.bf16.msra.mxu0 %v460
        %533 = vmatprep.subr.bf16.mxu0 0
        %534 = vmatpush1.bf16.msra.mxu0 %v461
        %535 = vmatprep.subr.bf16.mxu0 0
        %536 = vmatpush1.bf16.msra.mxu0 0
        %537 = vmatprep.subr.bf16.mxu0 0
        %538 = vmatpush1.bf16.msra.mxu0 0
        %539 = vmatprep.subr.bf16.mxu0 0
        %540 = vmatpush1.bf16.msra.mxu0 0
        %541 = vmatprep.subr.bf16.mxu0 0
        %542 = vmatpush1.bf16.msra.mxu0 0
        %543 = vmatprep.subr.bf16.mxu0 0
        %544 = vmatpush1.bf16.msra.mxu0 0
        %545 = vmatprep.subr.bf16.mxu0 0
        %546 = vmatpush1.bf16.msra.mxu0 0
        %547 = vmatprep.subr.bf16.mxu0 0
        %548 = vmatpush1.bf16.msra.mxu0 0
        %549 = vmatprep.subr.bf16.mxu0 0
        %550 = vmatpush1.bf16.msra.mxu0 0
        %551 = vmatprep.subr.bf16.mxu0 0
        %552 = vmatpush1.bf16.msra.mxu0 0
        %553 = vmatprep.subr.bf16.mxu0 0
        %554 = vmatpush1.bf16.msra.mxu0 0
        %555 = vmatprep.subr.bf16.mxu0 0
        %556 = vmatpush1.bf16.msra.mxu0 0
        %557 = vmatprep.subr.bf16.mxu0 0
        %558 = vmatpush1.bf16.msra.mxu0 0
        %559 = vmatprep.mubr.bf16.mxu0 0
        %560 = vmatmul.mubr.bf16.gmra.mrb[0].mxu0 %v516
        %v561 = vpop.f32.mrb[0].mxu0
        %v562 = vadd.f32 %v491, %v561
        %v563 = vpop.f32.mrb[0].mxu0
        %v564 = vpop.f32.mrb[0].mxu0
        %v565 = vadd.f32 %v493, %v564
        %v566 = vpop.f32.mrb[0].mxu0
        %567 = vmatprep.mubr.bf16.mxu0 0
        %568 = vmatmul.mubr.bf16.gmra.mrb[0].mxu0 %v519
        %v569 = vpop.f32.mrb[0].mxu0
        %v570 = vadd.f32 %v495, %v569
        %v571 = vpop.f32.mrb[0].mxu0
        %v572 = vpop.f32.mrb[0].mxu0
        %v573 = vadd.f32 %v497, %v572
        %v574 = vpop.f32.mrb[0].mxu0
        %575 = vmatprep.mubr.bf16.mxu0 0
        %576 = vmatmul.mubr.bf16.gmra.mrb[0].mxu0 %v522
        %v577 = vpop.f32.mrb[0].mxu0
        %v578 = vadd.f32 %v499, %v577
        %v579 = vpop.f32.mrb[0].mxu0
        %v580 = vpop.f32.mrb[0].mxu0
        %v581 = vadd.f32 %v501, %v580
        %v582 = vpop.f32.mrb[0].mxu0
        %583 = vmatprep.mubr.bf16.mxu0 0
        %584 = vmatmul.mubr.bf16.gmra.mrb[0].mxu0 %v525
        %v585 = vpop.f32.mrb[0].mxu0
        %v586 = vadd.f32 %v503, %v585
        %v587 = vpop.f32.mrb[0].mxu0
        %v588 = vpop.f32.mrb[0].mxu0
        %v589 = vadd.f32 %v505, %v588
        %v590 = vpop.f32.mrb[0].mxu0
        %591 = vdwg.mxu0
        %v592 = vlaneseq
        %v593 = vshrl.u32 %v592, 7
        %v594 = vsub.s32 0, %v593
        %v595 = vrot.slane %v317, %v594
        %v596 = vadd.f32 %v562, %v595
        %v597 = vadd.f32 %v565, %v595
        %v598 = vadd.f32 %v570, %v595
        %v599 = vadd.f32 %v573, %v595
        %v600 = vadd.f32 %v578, %v595
        %v601 = vadd.f32 %v581, %v595
        %v602 = vadd.f32 %v586, %v595
        %v603 = vadd.f32 %v589, %v595
        %v604 = vpack.c.bf16 %v597, %v596
        %v605 = vpack.c.bf16 %v599, %v598
        %v606 = vpack.c.bf16 %v601, %v600
        %v607 = vpack.c.bf16 %v603, %v602
        %v608 = vlaneseq
        %v609 = vshrl.u32 %v608, 7
        %v610 = vsub.s32 0, %v609
        %v611 = vrot.slane %v318, %v610
        %v620 = vunpack.c.l.b16 %v303
        %v621 = vunpack.c.l.b16 %v304
        %v622 = vunpack.c.l.b16 %v305
        %v623 = vunpack.c.l.b16 %v306
        %v624 = vunpack.c.l.b16 %v307
        %v625 = vunpack.c.l.b16 %v308
        %v626 = vunpack.c.l.b16 %v309
        %v627 = vunpack.c.l.b16 %v310
        %v628 = vpack.c.b16 %v621, %v620
        %v629 = vpack.c.b16 %v623, %v622
        %v630 = vpack.c.b16 %v625, %v624
        %v631 = vpack.c.b16 %v627, %v626
        %v637 = vsel %vm514, %v604, 0
        %v640 = vsel %vm514, %v605, 0
        %v643 = vsel %vm514, %v606, 0
        %v646 = vsel %vm514, %v607, 0
        %648 = vmatprep.subr.bf16.mxu0 0
        %649 = vmatpush1.bf16.msra.mxu0 %v628
        %650 = vmatprep.subr.bf16.mxu0 0
        %651 = vmatpush1.bf16.msra.mxu0 %v629
        %652 = vmatprep.subr.bf16.mxu0 0
        %653 = vmatpush1.bf16.msra.mxu0 %v630
        %654 = vmatprep.subr.bf16.mxu0 0
        %655 = vmatpush1.bf16.msra.mxu0 %v631
        %656 = vmatprep.subr.bf16.mxu0 0
        %657 = vmatpush1.bf16.msra.mxu0 0
        %658 = vmatprep.subr.bf16.mxu0 0
        %659 = vmatpush1.bf16.msra.mxu0 0
        %660 = vmatprep.subr.bf16.mxu0 0
        %661 = vmatpush1.bf16.msra.mxu0 0
        %662 = vmatprep.subr.bf16.mxu0 0
        %663 = vmatpush1.bf16.msra.mxu0 0
        %664 = vmatprep.subr.bf16.mxu0 0
        %665 = vmatpush1.bf16.msra.mxu0 0
        %666 = vmatprep.subr.bf16.mxu0 0
        %667 = vmatpush1.bf16.msra.mxu0 0
        %668 = vmatprep.subr.bf16.mxu0 0
        %669 = vmatpush1.bf16.msra.mxu0 0
        %670 = vmatprep.subr.bf16.mxu0 0
        %671 = vmatpush1.bf16.msra.mxu0 0
        %672 = vmatprep.subr.bf16.mxu0 0
        %673 = vmatpush1.bf16.msra.mxu0 0
        %674 = vmatprep.subr.bf16.mxu0 0
        %675 = vmatpush1.bf16.msra.mxu0 0
        %676 = vmatprep.subr.bf16.mxu0 0
        %677 = vmatpush1.bf16.msra.mxu0 0
        %678 = vmatprep.subr.bf16.mxu0 0
        %679 = vmatpush1.bf16.msra.mxu0 0
        %680 = vmatprep.mubr.bf16.mxu0 0
        %681 = vmatmul.mubr.bf16.gmra.mrb[0].mxu0 %v637
        %v682 = vpop.f32.mrb[0].mxu0
        %v683 = vadd.f32 %v611, %v682
        %v684 = vpop.f32.mrb[0].mxu0
        %v685 = vpop.f32.mrb[0].mxu0
        %v686 = vadd.f32 %v611, %v685
        %v687 = vpop.f32.mrb[0].mxu0
        %688 = vmatprep.mubr.bf16.mxu0 0
        %689 = vmatmul.mubr.bf16.gmra.mrb[0].mxu0 %v640
        %v690 = vpop.f32.mrb[0].mxu0
        %v691 = vadd.f32 %v611, %v690
        %v692 = vpop.f32.mrb[0].mxu0
        %v693 = vpop.f32.mrb[0].mxu0
        %v694 = vadd.f32 %v611, %v693
        %v695 = vpop.f32.mrb[0].mxu0
        %696 = vmatprep.mubr.bf16.mxu0 0
        %697 = vmatmul.mubr.bf16.gmra.mrb[0].mxu0 %v643
        %v698 = vpop.f32.mrb[0].mxu0
        %v699 = vadd.f32 %v611, %v698
        %v700 = vpop.f32.mrb[0].mxu0
        %v701 = vpop.f32.mrb[0].mxu0
        %v702 = vadd.f32 %v611, %v701
        %v703 = vpop.f32.mrb[0].mxu0
        %704 = vmatprep.mubr.bf16.mxu0 0
        %705 = vmatmul.mubr.bf16.gmra.mrb[0].mxu0 %v646
        %v706 = vpop.f32.mrb[0].mxu0
        %v707 = vadd.f32 %v611, %v706
        %v708 = vpop.f32.mrb[0].mxu0
        %v709 = vpop.f32.mrb[0].mxu0
        %v710 = vadd.f32 %v611, %v709
        %v711 = vpop.f32.mrb[0].mxu0
        %712 = vdwg.mxu0
        %v713 = vmax.f32 %v683, 0.0
        %v714 = vmax.f32 %v686, 0.0
        %v715 = vmax.f32 %v691, 0.0
        %v716 = vmax.f32 %v694, 0.0
        %v717 = vmax.f32 %v699, 0.0
        %v718 = vmax.f32 %v702, 0.0
        %v719 = vmax.f32 %v707, 0.0
        %v720 = vmax.f32 %v710, 0.0
        %v721 = vpack.c.bf16 %v714, %v713
        %v722 = vpack.c.bf16 %v716, %v715
        %v723 = vpack.c.bf16 %v718, %v717
        %v724 = vpack.c.bf16 %v720, %v719
        %v729 = vunpack.c.l.b16 %v311
        %v730 = vunpack.c.l.b16 %v312
        %v731 = vunpack.c.l.b16 %v313
        %v732 = vunpack.c.l.b16 %v314
        %v733 = vpack.c.b16 %v730, %v729
        %v734 = vpack.c.b16 %v732, %v731
        %vm737 = vcmask 261120
        %v739 = vsel %vm737, %v721, 0
        %v742 = vsel %vm737, %v722, 0
        %v745 = vsel %vm737, %v723, 0
        %v748 = vsel %vm737, %v724, 0
        %750 = vmatprep.subr.bf16.mxu0 0
        %751 = vmatpush1.bf16.msra.mxu0 %v733
        %752 = vmatprep.subr.bf16.mxu0 0
        %753 = vmatpush1.bf16.msra.mxu0 %v734
        %754 = vmatprep.subr.bf16.mxu0 0
        %755 = vmatpush1.bf16.msra.mxu0 0
        %756 = vmatprep.subr.bf16.mxu0 0
        %757 = vmatpush1.bf16.msra.mxu0 0
        %758 = vmatprep.subr.bf16.mxu0 0
        %759 = vmatpush1.bf16.msra.mxu0 0
        %760 = vmatprep.subr.bf16.mxu0 0
        %761 = vmatpush1.bf16.msra.mxu0 0
        %762 = vmatprep.subr.bf16.mxu0 0
        %763 = vmatpush1.bf16.msra.mxu0 0
        %764 = vmatprep.subr.bf16.mxu0 0
        %765 = vmatpush1.bf16.msra.mxu0 0
        %766 = vmatprep.subr.bf16.mxu0 0
        %767 = vmatpush1.bf16.msra.mxu0 0
        %768 = vmatprep.subr.bf16.mxu0 0
        %769 = vmatpush1.bf16.msra.mxu0 0
        %770 = vmatprep.subr.bf16.mxu0 0
        %771 = vmatpush1.bf16.msra.mxu0 0
        %772 = vmatprep.subr.bf16.mxu0 0
        %773 = vmatpush1.bf16.msra.mxu0 0
        %774 = vmatprep.subr.bf16.mxu0 0
        %775 = vmatpush1.bf16.msra.mxu0 0
        %776 = vmatprep.subr.bf16.mxu0 0
        %777 = vmatpush1.bf16.msra.mxu0 0
        %778 = vmatprep.subr.bf16.mxu0 0
        %779 = vmatpush1.bf16.msra.mxu0 0
        %780 = vmatprep.subr.bf16.mxu0 0
        %781 = vmatpush1.bf16.msra.mxu0 0
        %782 = vmatprep.mubr.bf16.mxu0 0
        %783 = vmatmul.mubr.bf16.gmra.mrb[0].mxu0 %v739
        %v784 = vpop.f32.mrb[0].mxu0
        %v785 = vadd.f32 0.0, %v784
        %v786 = vpop.f32.mrb[0].mxu0
        %v787 = vpop.f32.mrb[0].mxu0
        %v788 = vadd.f32 0.0, %v787
        %v789 = vpop.f32.mrb[0].mxu0
        %790 = vmatprep.mubr.bf16.mxu0 0
        %791 = vmatmul.mubr.bf16.gmra.mrb[0].mxu0 %v742
        %v792 = vpop.f32.mrb[0].mxu0
        %v793 = vadd.f32 0.0, %v792
        %v794 = vpop.f32.mrb[0].mxu0
        %v795 = vpop.f32.mrb[0].mxu0
        %v796 = vadd.f32 0.0, %v795
        %v797 = vpop.f32.mrb[0].mxu0
        %798 = vmatprep.mubr.bf16.mxu0 0
        %799 = vmatmul.mubr.bf16.gmra.mrb[0].mxu0 %v745
        %v800 = vpop.f32.mrb[0].mxu0
        %v801 = vadd.f32 0.0, %v800
        %v802 = vpop.f32.mrb[0].mxu0
        %v803 = vpop.f32.mrb[0].mxu0
        %v804 = vadd.f32 0.0, %v803
        %v805 = vpop.f32.mrb[0].mxu0
        %806 = vmatprep.mubr.bf16.mxu0 0
        %807 = vmatmul.mubr.bf16.gmra.mrb[0].mxu0 %v748
        %v808 = vpop.f32.mrb[0].mxu0
        %v809 = vadd.f32 0.0, %v808
        %v810 = vpop.f32.mrb[0].mxu0
        %v811 = vpop.f32.mrb[0].mxu0
        %v812 = vadd.f32 0.0, %v811
        %v813 = vpop.f32.mrb[0].mxu0
        %814 = vdwg.mxu0
        %v815 = vpack.c.bf16 %v788, %v785
        %v816 = vpack.c.bf16 %v796, %v793
        %v817 = vpack.c.bf16 %v804, %v801
        %v818 = vpack.c.bf16 %v812, %v809
        %827 = vrot.lane.b32.xlu0 %v785, 112
        %v828 = vpop.permute.xlu0 %827
        %829 = vrot.lane.b32.xlu0 %v788, 112
        %v830 = vpop.permute.xlu0 %829
        %831 = vrot.lane.b32.xlu0 %v793, 112
        %v832 = vpop.permute.xlu0 %831
        %833 = vrot.lane.b32.xlu0 %v796, 112
        %v834 = vpop.permute.xlu0 %833
        %835 = vrot.lane.b32.xlu0 %v801, 112
        %v836 = vpop.permute.xlu0 %835
        %837 = vrot.lane.b32.xlu0 %v804, 112
        %v838 = vpop.permute.xlu0 %837
        %839 = vrot.lane.b32.xlu0 %v809, 112
        %v840 = vpop.permute.xlu0 %839
        %841 = vrot.lane.b32.xlu0 %v812, 112
        %v842 = vpop.permute.xlu0 %841
        %851 = vmatprep.subr.bf16.mxu0 0
        %852 = vmatpush1.bf16.msra.mxu0 %v815
        %853 = vmatprep.subr.bf16.mxu0 0
        %854 = vmatpush1.bf16.msra.mxu0 %v816
        %855 = vmatprep.subr.bf16.mxu0 0
        %856 = vmatpush1.bf16.msra.mxu0 %v817
        %857 = vmatprep.subr.bf16.mxu0 0
        %858 = vmatpush1.bf16.msra.mxu0 %v818
        %859 = vmatprep.subr.bf16.mxu0 0
        %860 = vmatpush1.bf16.msra.mxu0 0
        %861 = vmatprep.subr.bf16.mxu0 0
        %862 = vmatpush1.bf16.msra.mxu0 0
        %863 = vmatprep.subr.bf16.mxu0 0
        %864 = vmatpush1.bf16.msra.mxu0 0
        %865 = vmatprep.subr.bf16.mxu0 0
        %866 = vmatpush1.bf16.msra.mxu0 0
        %867 = vmatprep.subr.bf16.mxu0 0
        %868 = vmatpush1.bf16.msra.mxu0 0
        %869 = vmatprep.subr.bf16.mxu0 0
        %870 = vmatpush1.bf16.msra.mxu0 0
        %871 = vmatprep.subr.bf16.mxu0 0
        %872 = vmatpush1.bf16.msra.mxu0 0
        %873 = vmatprep.subr.bf16.mxu0 0
        %874 = vmatpush1.bf16.msra.mxu0 0
        %875 = vmatprep.subr.bf16.mxu0 0
        %876 = vmatpush1.bf16.msra.mxu0 0
        %877 = vmatprep.subr.bf16.mxu0 0
        %878 = vmatpush1.bf16.msra.mxu0 0
        %879 = vmatprep.subr.bf16.mxu0 0
        %880 = vmatpush1.bf16.msra.mxu0 0
        %881 = vmatprep.subr.bf16.mxu0 0
        %882 = vmatpush1.bf16.msra.mxu0 0
        %883 = vmatprep.mubr.bf16.mxu0 0
        %884 = vmatmul.mubr.bf16.gmra.mrb[0].mxu0 %v516
        %v885 = vpop.f32.mrb[0].mxu0
        %v886 = vadd.f32 %v828, %v885
        %v887 = vpop.f32.mrb[0].mxu0
        %v888 = vpop.f32.mrb[0].mxu0
        %v889 = vadd.f32 %v830, %v888
        %v890 = vpop.f32.mrb[0].mxu0
        %891 = vmatprep.mubr.bf16.mxu0 0
        %892 = vmatmul.mubr.bf16.gmra.mrb[0].mxu0 %v519
        %v893 = vpop.f32.mrb[0].mxu0
        %v894 = vadd.f32 %v832, %v893
        %v895 = vpop.f32.mrb[0].mxu0
        %v896 = vpop.f32.mrb[0].mxu0
        %v897 = vadd.f32 %v834, %v896
        %v898 = vpop.f32.mrb[0].mxu0
        %899 = vmatprep.mubr.bf16.mxu0 0
        %900 = vmatmul.mubr.bf16.gmra.mrb[0].mxu0 %v522
        %v901 = vpop.f32.mrb[0].mxu0
        %v902 = vadd.f32 %v836, %v901
        %v903 = vpop.f32.mrb[0].mxu0
        %v904 = vpop.f32.mrb[0].mxu0
        %v905 = vadd.f32 %v838, %v904
        %v906 = vpop.f32.mrb[0].mxu0
        %907 = vmatprep.mubr.bf16.mxu0 0
        %908 = vmatmul.mubr.bf16.gmra.mrb[0].mxu0 %v525
        %v909 = vpop.f32.mrb[0].mxu0
        %v910 = vadd.f32 %v840, %v909
        %v911 = vpop.f32.mrb[0].mxu0
        %v912 = vpop.f32.mrb[0].mxu0
        %v913 = vadd.f32 %v842, %v912
        %v914 = vpop.f32.mrb[0].mxu0
        %915 = vdwg.mxu0
        %v916 = vlaneseq
        %v917 = vshrl.u32 %v916, 7
        %v918 = vsub.s32 0, %v917
        %v919 = vrot.slane %v319, %v918
        %v920 = vadd.f32 %v886, %v919
        %v921 = vadd.f32 %v889, %v919
        %v922 = vadd.f32 %v894, %v919
        %v923 = vadd.f32 %v897, %v919
        %v924 = vadd.f32 %v902, %v919
        %v925 = vadd.f32 %v905, %v919
        %v926 = vadd.f32 %v910, %v919
        %v927 = vadd.f32 %v913, %v919
        %v928 = vpack.c.bf16 %v921, %v920
        %v929 = vpack.c.bf16 %v923, %v922
        %v930 = vpack.c.bf16 %v925, %v924
        %v931 = vpack.c.bf16 %v927, %v926
        %v932 = vlaneseq
        %v933 = vshrl.u32 %v932, 7
        %v934 = vsub.s32 0, %v933
        %v935 = vrot.slane %v320, %v934
        %v938 = vunpack.c.l.b16 %v315
        %v939 = vunpack.c.l.b16 %v316
        %v940 = vpack.c.b16 %v939, %v938
        %vm942 = vcmask 130048
        %v944 = vsel %vm942, %v928, 0
        %v947 = vsel %vm942, %v929, 0
        %v950 = vsel %vm942, %v930, 0
        %v953 = vsel %vm942, %v931, 0
        %955 = vmatprep.subr.bf16.mxu0 0
        %956 = vmatpush1.bf16.msra.mxu0 %v940
        %957 = vmatprep.subr.bf16.mxu0 0
        %958 = vmatpush1.bf16.msra.mxu0 0
        %959 = vmatprep.subr.bf16.mxu0 0
        %960 = vmatpush1.bf16.msra.mxu0 0
        %961 = vmatprep.subr.bf16.mxu0 0
        %962 = vmatpush1.bf16.msra.mxu0 0
        %963 = vmatprep.subr.bf16.mxu0 0
        %964 = vmatpush1.bf16.msra.mxu0 0
        %965 = vmatprep.subr.bf16.mxu0 0
        %966 = vmatpush1.bf16.msra.mxu0 0
        %967 = vmatprep.subr.bf16.mxu0 0
        %968 = vmatpush1.bf16.msra.mxu0 0
        %969 = vmatprep.subr.bf16.mxu0 0
        %970 = vmatpush1.bf16.msra.mxu0 0
        %971 = vmatprep.subr.bf16.mxu0 0
        %972 = vmatpush1.bf16.msra.mxu0 0
        %973 = vmatprep.subr.bf16.mxu0 0
        %974 = vmatpush1.bf16.msra.mxu0 0
        %975 = vmatprep.subr.bf16.mxu0 0
        %976 = vmatpush1.bf16.msra.mxu0 0
        %977 = vmatprep.subr.bf16.mxu0 0
        %978 = vmatpush1.bf16.msra.mxu0 0
        %979 = vmatprep.subr.bf16.mxu0 0
        %980 = vmatpush1.bf16.msra.mxu0 0
        %981 = vmatprep.subr.bf16.mxu0 0
        %982 = vmatpush1.bf16.msra.mxu0 0
        %983 = vmatprep.subr.bf16.mxu0 0
        %984 = vmatpush1.bf16.msra.mxu0 0
        %985 = vmatprep.subr.bf16.mxu0 0
        %986 = vmatpush1.bf16.msra.mxu0 0
        %987 = vmatprep.mubr.bf16.mxu0 0
        %988 = vmatmul.mubr.bf16.gmra.mrb[0].mxu0 %v944
        %v989 = vpop.f32.mrb[0].mxu0
        %v990 = vadd.f32 %v935, %v989
        %v991 = vpop.f32.mrb[0].mxu0
        %v992 = vpop.f32.mrb[0].mxu0
        %v993 = vadd.f32 %v935, %v992
        %v994 = vpop.f32.mrb[0].mxu0
        %995 = vmatprep.mubr.bf16.mxu0 0
        %996 = vmatmul.mubr.bf16.gmra.mrb[0].mxu0 %v947
        %v997 = vpop.f32.mrb[0].mxu0
        %v998 = vadd.f32 %v935, %v997
        %v999 = vpop.f32.mrb[0].mxu0
        %v1000 = vpop.f32.mrb[0].mxu0
        %v1001 = vadd.f32 %v935, %v1000
        %v1002 = vpop.f32.mrb[0].mxu0
        %1003 = vmatprep.mubr.bf16.mxu0 0
        %1004 = vmatmul.mubr.bf16.gmra.mrb[0].mxu0 %v950
        %v1005 = vpop.f32.mrb[0].mxu0
        %v1006 = vadd.f32 %v935, %v1005
        %v1007 = vpop.f32.mrb[0].mxu0
        %v1008 = vpop.f32.mrb[0].mxu0
        %v1009 = vadd.f32 %v935, %v1008
        %v1010 = vpop.f32.mrb[0].mxu0
        %1011 = vmatprep.mubr.bf16.mxu0 0
        %1012 = vmatmul.mubr.bf16.gmra.mrb[0].mxu0 %v953
        %v1013 = vpop.f32.mrb[0].mxu0
        %v1014 = vadd.f32 %v935, %v1013
        %v1015 = vpop.f32.mrb[0].mxu0
        %v1016 = vpop.f32.mrb[0].mxu0
        %v1017 = vadd.f32 %v935, %v1016
        %v1018 = vpop.f32.mrb[0].mxu0
        %1019 = vdwg.mxu0
        %1020 = vmax.xlane.f32.xlu0 %v990
        %v1021 = vpop.xlane.xlu0 %1020
        %1022 = vmax.xlane.f32.xlu0 %v993
        %v1023 = vpop.xlane.xlu0 %1022
        %1024 = vmax.xlane.f32.xlu0 %v998
        %v1025 = vpop.xlane.xlu0 %1024
        %1026 = vmax.xlane.f32.xlu0 %v1001
        %v1027 = vpop.xlane.xlu0 %1026
        %1028 = vmax.xlane.f32.xlu0 %v1006
        %v1029 = vpop.xlane.xlu0 %1028
        %1030 = vmax.xlane.f32.xlu0 %v1009
        %v1031 = vpop.xlane.xlu0 %1030
        %1032 = vmax.xlane.f32.xlu0 %v1014
        %v1033 = vpop.xlane.xlu0 %1032
        %1034 = vmax.xlane.f32.xlu0 %v1017
        %v1035 = vpop.xlane.xlu0 %1034
        %v1036 = vsub.f32 %v990, %v1021
        %v1037 = vsub.f32 %v993, %v1023
        %v1038 = vsub.f32 %v998, %v1025
        %v1039 = vsub.f32 %v1001, %v1027
        %v1040 = vsub.f32 %v1006, %v1029
        %v1041 = vsub.f32 %v1009, %v1031
        %v1042 = vsub.f32 %v1014, %v1033
        %v1043 = vsub.f32 %v1017, %v1035
        %v1044 = vmul.f32 %v1036, 1.442695
        %v1045 = vpow.pop %v1044
        %v1046 = vmul.f32 %v1037, 1.442695
        %v1047 = vpow.pop %v1046
        %v1048 = vmul.f32 %v1038, 1.442695
        %v1049 = vpow.pop %v1048
        %v1050 = vmul.f32 %v1039, 1.442695
        %v1051 = vpow.pop %v1050
        %v1052 = vmul.f32 %v1040, 1.442695
        %v1053 = vpow.pop %v1052
        %v1054 = vmul.f32 %v1041, 1.442695
        %v1055 = vpow.pop %v1054
        %v1056 = vmul.f32 %v1042, 1.442695
        %v1057 = vpow.pop %v1056
        %v1058 = vmul.f32 %v1043, 1.442695
        %v1059 = vpow.pop %v1058
        %1060 = vadd.xlane.f32.xlu0 %v1045
        %v1061 = vpop.xlane.xlu0 %1060
        %1062 = vadd.xlane.f32.xlu0 %v1047
        %v1063 = vpop.xlane.xlu0 %1062
        %1064 = vadd.xlane.f32.xlu0 %v1049
        %v1065 = vpop.xlane.xlu0 %1064
        %1066 = vadd.xlane.f32.xlu0 %v1051
        %v1067 = vpop.xlane.xlu0 %1066
        %1068 = vadd.xlane.f32.xlu0 %v1053
        %v1069 = vpop.xlane.xlu0 %1068
        %1070 = vadd.xlane.f32.xlu0 %v1055
        %v1071 = vpop.xlane.xlu0 %1070
        %1072 = vadd.xlane.f32.xlu0 %v1057
        %v1073 = vpop.xlane.xlu0 %1072
        %1074 = vadd.xlane.f32.xlu0 %v1059
        %v1075 = vpop.xlane.xlu0 %1074
        %v1076 = vlog2.pop %v1061
        %v1077 = vmul.f32 %v1076, 0.6931472
        %v1078 = vlog2.pop %v1063
        %v1079 = vmul.f32 %v1078, 0.6931472
        %v1080 = vlog2.pop %v1065
        %v1081 = vmul.f32 %v1080, 0.6931472
        %v1082 = vlog2.pop %v1067
        %v1083 = vmul.f32 %v1082, 0.6931472
        %v1084 = vlog2.pop %v1069
        %v1085 = vmul.f32 %v1084, 0.6931472
        %v1086 = vlog2.pop %v1071
        %v1087 = vmul.f32 %v1086, 0.6931472
        %v1088 = vlog2.pop %v1073
        %v1089 = vmul.f32 %v1088, 0.6931472
        %v1090 = vlog2.pop %v1075
        %v1091 = vmul.f32 %v1090, 0.6931472
        %v1092 = vsub.f32 %v1036, %v1077
        %v1093 = vsub.f32 %v1037, %v1079
        %v1094 = vsub.f32 %v1038, %v1081
        %v1095 = vsub.f32 %v1039, %v1083
        %v1096 = vsub.f32 %v1040, %v1085
        %v1097 = vsub.f32 %v1041, %v1087
        %v1098 = vsub.f32 %v1042, %v1089
        %v1099 = vsub.f32 %v1043, %v1091
        %1100 = vst [vmem:[%s269] sm:$0xff] %v1092
        %1101 = vst [vmem:[%s269 + $0x8] sm:$0xff] %v1093
        %1102 = vst [vmem:[%s269 + $0x10] sm:$0xff] %v1094
        %1103 = vst [vmem:[%s269 + $0x18] sm:$0xff] %v1095
        %1104 = vst [vmem:[%s269 + $0x20] sm:$0xff] %v1096
        %1105 = vst [vmem:[%s269 + $0x28] sm:$0xff] %v1097
        %1106 = vst [vmem:[%s269 + $0x30] sm:$0xff] %v1098
        %1107 = vst [vmem:[%s269 + $0x38] sm:$0xff] %v1099
        %s1108 = sand.u32 %s126, 1
        %s1109 = scalar_lea.sflag [#allocation4], %s1108
        %s1110 = sand.u32 %s126, 1
        %s1111 = smul.addr %s1110, 64
        %s1112 = scalar_lea.vmem [#allocation8], %s1111
        // Predicated region
        $region49: #{tpu_custom_call.1} parent=35 // pred_check
          %p1113 = pneg %p136
        $region50: #{tpu_custom_call.1} parent=35 // pred_check_branch
          %1115 = sbr.rel (%p1113) target = $region52
        $region51: #{tpu_custom_call.1} parent=35 // pred_region
          %s1117 = ssub.s32 1024, 1024
          %1118 = vsyncadd %s1109, %s1117
          %s1119 = smul.addr %s24, 8
          %s1120 = smul.addr %s1119, 128
          %s1121 = scalar_lea.hbm %s4, %s1120
          %s1122 = sshll.u32 %s1112, 4
          %s1123 = int_to_ptr.vmem [resolvable:$true] %s1122
          %1128 = dma.vmem_to_hbm [thread:$0]  %s1123, 1024, %s1121, %s1109, 128, 128, 8
        $region52: #{tpu_custom_call.1} parent=35 // pred_fallthru
          _
      $region36: #{tpu_custom_call.1} parent=5 // pred_fallthru
        _
      %p1129 = scmp.le.s32.totalorder 2, %s19
      // Predicated region
      $region53: #{tpu_custom_call.1} parent=5 // pred_check
        %p1130 = pneg %p1129
      $region54: #{tpu_custom_call.1} parent=5 // pred_check_branch
        %1132 = sbr.rel (%p1130) target = $region56
      $region55: #{tpu_custom_call.1} parent=5 // pred_region
        %s1133 = ssub.s32 %s19, 2
        // Predicated region
        $region57: #{tpu_custom_call.1} parent=55 // pred_check
          %p1134 = pneg %p142
        $region58: #{tpu_custom_call.1} parent=55 // pred_check_branch
          %1136 = sbr.rel (%p1134) target = $region60
        $region59: #{tpu_custom_call.1} parent=55 // pred_region
          %s1137 = sand.u32 %s127, 1
          %s1138 = scalar_lea.sflag [#allocation4], %s1137
          %s1139 = sand.u32 %s127, 1
          %s1140 = smul.addr %s1139, 64
          %s1141 = scalar_lea.vmem [#allocation8], %s1140
          %1142 = dma.done %s1138, 1024
        $region60: #{tpu_custom_call.1} parent=55 // pred_fallthru
          _
      $region56: #{tpu_custom_call.1} parent=5 // pred_fallthru
        _
    $region6: #{tpu_custom_call.1} parent=1 // loop_footer
      %s23 = sadd.s32 1, %s19
    $region7: #{tpu_custom_call.1} parent=1 // loop_footer_branch
      %18 = sbr.rel target = $region3
    $region8: #{tpu_custom_call.1} parent=1 // loop_exit
      _
    %1143 = vsyncpa [#allocation3], 1
    %s1144 = scalar_lea.sflag [#allocation3], 1
    %1145 = vsyncpa %s1144, 1
    %1146 = vsyncpa [#allocation6], 1
    %s1147 = scalar_lea.sflag [#allocation6], 1
    %1148 = vsyncpa %s1147, 1
    %1149 = vsyncpa [#allocation4], 1
    %s1150 = scalar_lea.sflag [#allocation4], 1
    %1151 = vsyncpa %s1150, 1

</llo_original>
